<compile_context>
chip_gen: v5e
topology: v5e:2x2
jax: 0.10.0
libtpu: 0.0.40
codegen_flags: <defaults>
</compile_context>

<pallas_src>
import functools

import jax
import jax.numpy as jnp
from jax import lax
from jax.experimental import pallas as pl
from jax.experimental.pallas import tpu as pltpu


def _round_up(x, m):
    return ((x + m - 1) // m) * m


def _lstm_kernel(x_ref, smalls_ref, whh_t_ref, out_ref, *,
                 seq_len, input_size, hidden_pad, output_size):
    Hp = hidden_pad
    G = 4 * Hp
    r_bias = input_size
    r_wlin = input_size + 1
    r_blin = r_wlin + output_size

    x = x_ref[...]                                  # (seq_len, input_size)
    wih_t = smalls_ref[0:input_size, :]             # (input_size, G) — i/f/o pre-scaled by 0.5
    bias = smalls_ref[r_bias:r_bias + 1, :]         # (1, G)          — i/f/o pre-scaled by 0.5

    # ---- hoisted input projection for ALL timesteps (kept in vregs) --------
    if input_size == 1:
        # degenerate K=1 matmul -> keep it off the MXU, plain VPU broadcast mul
        xw = x * wih_t                              # (seq_len, G)
    else:
        xw = jnp.dot(x, wih_t, preferred_element_type=jnp.float32)
    xwb = xw + bias                                 # (seq_len, G), ~4 vregs for seq_len=8

    whh_t = whh_t_ref[...]                          # (Hp, G), loop-invariant

    # TODO(synk): keeping W_hh resident in the MXU staging registers across
    # timesteps (pltpu.matmul_push_rhs / matmul_acc_lhs / matmul_pop) would drop
    # ~7 redundant weight pushes; left as jnp.dot for portable lowering.
    h = jnp.zeros((1, Hp), jnp.float32)
    c = jnp.zeros((1, Hp), jnp.float32)
    for t in range(seq_len):                        # fully unrolled, static slices
        gates = xwb[t:t + 1, :] + jnp.dot(h, whh_t,
                                          preferred_element_type=jnp.float32)
        act = jnp.tanh(gates)                       # ONE EUP slab per step
        sig = 0.5 * act[:, 0:3 * Hp] + 0.5          # sigmoid(z) = 0.5*tanh(z/2)+0.5
        i = sig[:, 0:Hp]
        f = sig[:, Hp:2 * Hp]
        o = sig[:, 2 * Hp:3 * Hp]
        g = act[:, 3 * Hp:G]
        c = f * c + i * g
        h = o * jnp.tanh(c)

    # ---- output projection: VPU multiply + lane reduction (no final MXU) ---
    wlin = smalls_ref[r_wlin:r_wlin + output_size, 0:Hp]   # (output_size, Hp)
    blin = smalls_ref[r_blin:r_blin + output_size, 0:1]    # (output_size, 1)
    out_ref[...] = jnp.sum(h * wlin, axis=-1, keepdims=True) + blin


def prepare_lstm_weights(params, *, hidden_size, output_size):
    """One-time weight prep (reorder/pad/pre-scale/pack). Cache the result;
    the per-call path is then just a single pallas_call."""
    w_ih, w_hh, b_ih, b_hh, w_lin, b_lin = params
    H = hidden_size
    input_size = w_ih.shape[1]
    Hp = max(_round_up(H, 128), 128)                # lane-align every gate boundary
    G = 4 * Hp

    # PyTorch gate order (i, f, g, o) -> kernel order (i, f, o, g); each gate
    # block zero-padded to Hp.  The i/f/o blocks are pre-scaled by 0.5 so the
    # kernel evaluates sigmoid via a single tanh: sigmoid(z) = 0.5*tanh(0.5*z)+0.5.
    def reorder_pad_rows(w):                        # (4H, X) -> (4*Hp, X)
        i, f, g, o = jnp.split(w, 4, axis=0)
        pad = lambda blk, s: jnp.pad(s * blk, ((0, Hp - H), (0, 0)))
        return jnp.concatenate([pad(i, 0.5), pad(f, 0.5), pad(o, 0.5), pad(g, 1.0)],
                               axis=0)

    def reorder_pad_vec(v):                         # (4H,) -> (4*Hp,)
        i, f, g, o = jnp.split(v, 4)
        pad = lambda blk, s: jnp.pad(s * blk, (0, Hp - H))
        return jnp.concatenate([pad(i, 0.5), pad(f, 0.5), pad(o, 0.5), pad(g, 1.0)])

    wih_t = reorder_pad_rows(w_ih).T                                  # (input_size, G)
    whh_t = jnp.pad(reorder_pad_rows(w_hh), ((0, 0), (0, Hp - H))).T  # (Hp, G)
    bias = reorder_pad_vec(b_ih + b_hh)                               # (G,)

    # Pack all small per-call-invariant operands into ONE buffer (1 DMA).
    rows = input_size + 1 + 2 * output_size
    rows_pad = _round_up(rows, 8)
    smalls = jnp.zeros((rows_pad, G), jnp.float32)
    smalls = smalls.at[0:input_size, :].set(wih_t)
    smalls = smalls.at[input_size, :].set(bias)
    smalls = smalls.at[input_size + 1:input_size + 1 + output_size, 0:H].set(w_lin)
    smalls = smalls.at[input_size + 1 + output_size:rows, 0].set(b_lin)

    return dict(smalls=jax.device_put(smalls),
                whh_t=jax.device_put(whh_t),
                output_size=output_size)


@functools.partial(jax.jit, static_argnames=("output_size",))
def _lstm_pallas(x_seq, smalls, whh_t, *, output_size):
    seq_len, input_size = x_seq.shape
    Hp = whh_t.shape[0]
    kernel = functools.partial(_lstm_kernel, seq_len=seq_len,
                               input_size=input_size, hidden_pad=Hp,
                               output_size=output_size)
    out = pl.pallas_call(
        kernel,
        out_shape=jax.ShapeDtypeStruct((output_size, 1), jnp.float32),
        in_specs=[pl.BlockSpec(memory_space=pltpu.MemorySpace.VMEM)] * 3,
        out_specs=pl.BlockSpec(memory_space=pltpu.MemorySpace.VMEM),
    )(x_seq, smalls, whh_t)
    return out[:, 0]


def lstm_forward(x_seq, prepped):
    """Equivalent of LSTM.forward(input_seq) -> predictions[-1]; shape (output_size,)."""
    return _lstm_pallas(x_seq, prepped["smalls"], prepped["whh_t"],
                        output_size=prepped["output_size"])


def lstm_reference(x_seq, params, *, hidden_size):
    """Pure-JAX reference implementing torch.nn.LSTM + Linear (last step)."""
    w_ih, w_hh, b_ih, b_hh, w_lin, b_lin = params
    H = hidden_size

    def step(carry, x_t):
        h, c = carry
        gates = x_t @ w_ih.T + h @ w_hh.T + b_ih + b_hh
        i = jax.nn.sigmoid(gates[0 * H:1 * H])
        f = jax.nn.sigmoid(gates[1 * H:2 * H])
        g = jnp.tanh(gates[2 * H:3 * H])
        o = jax.nn.sigmoid(gates[3 * H:4 * H])
        c = f * c + i * g
        h = o * jnp.tanh(c)
        return (h, c), h

    (h, _), _ = lax.scan(step, (jnp.zeros(H), jnp.zeros(H)), x_seq)
    return h @ w_lin.T + b_lin


def init_params(key, input_size, hidden_size, output_size):
    # PyTorch-style uniform(-1/sqrt(H), 1/sqrt(H)) init, deterministic.
    k = 1.0 / jnp.sqrt(jnp.float32(hidden_size))
    ks = jax.random.split(key, 6)
    w_ih = jax.random.uniform(ks[0], (4 * hidden_size, input_size), jnp.float32, -k, k)
    w_hh = jax.random.uniform(ks[1], (4 * hidden_size, hidden_size), jnp.float32, -k, k)
    b_ih = jax.random.uniform(ks[2], (4 * hidden_size,), jnp.float32, -k, k)
    b_hh = jax.random.uniform(ks[3], (4 * hidden_size,), jnp.float32, -k, k)
    w_lin = jax.random.uniform(ks[4], (output_size, hidden_size), jnp.float32, -k, k)
    b_lin = jax.random.uniform(ks[5], (output_size,), jnp.float32, -k, k)
    return (w_ih, w_hh, b_ih, b_hh, w_lin, b_lin)


if __name__ == "__main__":
    input_size, hidden_size, output_size = 1, 50, 1
    seq_len = 8

    key = jax.random.PRNGKey(0)
    pkey, xkey = jax.random.split(key)
    params = init_params(pkey, input_size, hidden_size, output_size)

    # input_seq: a length-8 sequence of scalars, as the PyTorch forward implies.
    x_seq = jax.random.normal(xkey, (seq_len, input_size), jnp.float32)

    # One-time weight prep (cached); per-call path is only the pallas_call.
    prepped = prepare_lstm_weights(params, hidden_size=hidden_size,
                                   output_size=output_size)

    # TODO(synk): the PyTorch module carries self.hidden_cell across forward
    # calls; here each call starts from the zero state (as at construction).
    out = lstm_forward(x_seq, prepped)
    out = jax.block_until_ready(out)

    ref = lstm_reference(x_seq, params, hidden_size=hidden_size)
    assert out.shape == (output_size,)
    assert jnp.allclose(out, ref, atol=2e-3, rtol=2e-3), (out, ref)

    print("KERNEL_OK")
</pallas_src>

<mosaic_0001>
module attributes {stable_mosaic.version = 11 : i64} {
  func.func @_lstm_kernel(%arg0: memref<8x1xf32, #tpu.memory_space<vmem>>, %arg1: memref<8x512xf32, #tpu.memory_space<vmem>>, %arg2: memref<128x512xf32, #tpu.memory_space<vmem>>, %arg3: memref<1x1xf32, #tpu.memory_space<vmem>>) attributes {dimension_semantics = [], scalar_prefetch = 0 : i64, scratch_operands = 0 : i64, tpu.core_type = #tpu.core_type<tc>} {
    %c0 = arith.constant 0 : index
    %c0_0 = arith.constant 0 : index
    %0 = vector.load %arg0[%c0, %c0_0] : memref<8x1xf32, #tpu.memory_space<vmem>>, vector<8x1xf32>
    %c0_1 = arith.constant 0 : index
    %c0_2 = arith.constant 0 : index
    %1 = vector.load %arg1[%c0_1, %c0_2] : memref<8x512xf32, #tpu.memory_space<vmem>>, vector<1x512xf32>
    %c1 = arith.constant 1 : index
    %c0_3 = arith.constant 0 : index
    %2 = vector.load %arg1[%c1, %c0_3] : memref<8x512xf32, #tpu.memory_space<vmem>>, vector<1x512xf32>
    %3 = vector.broadcast %0 : vector<8x1xf32> to vector<8x512xf32>
    %4 = vector.broadcast %1 : vector<1x512xf32> to vector<8x512xf32>
    %5 = arith.mulf %3, %4 : vector<8x512xf32>
    %6 = vector.broadcast %2 : vector<1x512xf32> to vector<8x512xf32>
    %7 = arith.addf %5, %6 : vector<8x512xf32>
    %c0_4 = arith.constant 0 : index
    %c0_5 = arith.constant 0 : index
    %8 = vector.load %arg2[%c0_4, %c0_5] : memref<128x512xf32, #tpu.memory_space<vmem>>, vector<128x512xf32>
    %cst = arith.constant 0.000000e+00 : f32
    %9 = vector.broadcast %cst : f32 to vector<1x128xf32>
    %cst_6 = arith.constant 0.000000e+00 : f32
    %10 = vector.broadcast %cst_6 : f32 to vector<1x128xf32>
    %11 = vector.extract_strided_slice %7 {offsets = [0, 0], sizes = [1, 512], strides = [1, 1]} : vector<8x512xf32> to vector<1x512xf32>
    %cst_7 = arith.constant dense<0.000000e+00> : vector<1x512xf32>
    %12 = tpu.matmul %9, %8, %cst_7 {dimension_numbers = #tpu.dot_dimension_numbers<[1], [0], [0], [1], [0, 0, 1, 1], [], []>} : vector<1x128xf32>, vector<128x512xf32>, vector<1x512xf32> -> vector<1x512xf32>
    %13 = arith.addf %11, %12 : vector<1x512xf32>
    %14 = math.tanh %13 : vector<1x512xf32>
    %15 = vector.extract_strided_slice %14 {offsets = [0, 0], sizes = [1, 384], strides = [1, 1]} : vector<1x512xf32> to vector<1x384xf32>
    %cst_8 = arith.constant 5.000000e-01 : f32
    %16 = vector.broadcast %cst_8 : f32 to vector<1x384xf32>
    %17 = arith.mulf %16, %15 : vector<1x384xf32>
    %cst_9 = arith.constant 5.000000e-01 : f32
    %18 = vector.broadcast %cst_9 : f32 to vector<1x384xf32>
    %19 = arith.addf %17, %18 : vector<1x384xf32>
    %20 = vector.extract_strided_slice %19 {offsets = [0, 0], sizes = [1, 128], strides = [1, 1]} : vector<1x384xf32> to vector<1x128xf32>
    %21 = vector.extract_strided_slice %19 {offsets = [0, 128], sizes = [1, 128], strides = [1, 1]} : vector<1x384xf32> to vector<1x128xf32>
    %22 = vector.extract_strided_slice %19 {offsets = [0, 256], sizes = [1, 128], strides = [1, 1]} : vector<1x384xf32> to vector<1x128xf32>
    %23 = vector.extract_strided_slice %14 {offsets = [0, 384], sizes = [1, 128], strides = [1, 1]} : vector<1x512xf32> to vector<1x128xf32>
    %24 = arith.mulf %21, %10 : vector<1x128xf32>
    %25 = arith.mulf %20, %23 : vector<1x128xf32>
    %26 = arith.addf %24, %25 : vector<1x128xf32>
    %27 = math.tanh %26 : vector<1x128xf32>
    %28 = arith.mulf %22, %27 : vector<1x128xf32>
    %29 = vector.extract_strided_slice %7 {offsets = [1, 0], sizes = [1, 512], strides = [1, 1]} : vector<8x512xf32> to vector<1x512xf32>
    %cst_10 = arith.constant dense<0.000000e+00> : vector<1x512xf32>
    %30 = tpu.matmul %28, %8, %cst_10 {dimension_numbers = #tpu.dot_dimension_numbers<[1], [0], [0], [1], [0, 0, 1, 1], [], []>} : vector<1x128xf32>, vector<128x512xf32>, vector<1x512xf32> -> vector<1x512xf32>
    %31 = arith.addf %29, %30 : vector<1x512xf32>
    %32 = math.tanh %31 : vector<1x512xf32>
    %33 = vector.extract_strided_slice %32 {offsets = [0, 0], sizes = [1, 384], strides = [1, 1]} : vector<1x512xf32> to vector<1x384xf32>
    %cst_11 = arith.constant 5.000000e-01 : f32
    %34 = vector.broadcast %cst_11 : f32 to vector<1x384xf32>
    %35 = arith.mulf %34, %33 : vector<1x384xf32>
    %cst_12 = arith.constant 5.000000e-01 : f32
    %36 = vector.broadcast %cst_12 : f32 to vector<1x384xf32>
    %37 = arith.addf %35, %36 : vector<1x384xf32>
    %38 = vector.extract_strided_slice %37 {offsets = [0, 0], sizes = [1, 128], strides = [1, 1]} : vector<1x384xf32> to vector<1x128xf32>
    %39 = vector.extract_strided_slice %37 {offsets = [0, 128], sizes = [1, 128], strides = [1, 1]} : vector<1x384xf32> to vector<1x128xf32>
    %40 = vector.extract_strided_slice %37 {offsets = [0, 256], sizes = [1, 128], strides = [1, 1]} : vector<1x384xf32> to vector<1x128xf32>
    %41 = vector.extract_strided_slice %32 {offsets = [0, 384], sizes = [1, 128], strides = [1, 1]} : vector<1x512xf32> to vector<1x128xf32>
    %42 = arith.mulf %39, %26 : vector<1x128xf32>
    %43 = arith.mulf %38, %41 : vector<1x128xf32>
    %44 = arith.addf %42, %43 : vector<1x128xf32>
    %45 = math.tanh %44 : vector<1x128xf32>
    %46 = arith.mulf %40, %45 : vector<1x128xf32>
    %47 = vector.extract_strided_slice %7 {offsets = [2, 0], sizes = [1, 512], strides = [1, 1]} : vector<8x512xf32> to vector<1x512xf32>
    %cst_13 = arith.constant dense<0.000000e+00> : vector<1x512xf32>
    %48 = tpu.matmul %46, %8, %cst_13 {dimension_numbers = #tpu.dot_dimension_numbers<[1], [0], [0], [1], [0, 0, 1, 1], [], []>} : vector<1x128xf32>, vector<128x512xf32>, vector<1x512xf32> -> vector<1x512xf32>
    %49 = arith.addf %47, %48 : vector<1x512xf32>
    %50 = math.tanh %49 : vector<1x512xf32>
    %51 = vector.extract_strided_slice %50 {offsets = [0, 0], sizes = [1, 384], strides = [1, 1]} : vector<1x512xf32> to vector<1x384xf32>
    %cst_14 = arith.constant 5.000000e-01 : f32
    %52 = vector.broadcast %cst_14 : f32 to vector<1x384xf32>
    %53 = arith.mulf %52, %51 : vector<1x384xf32>
    %cst_15 = arith.constant 5.000000e-01 : f32
    %54 = vector.broadcast %cst_15 : f32 to vector<1x384xf32>
    %55 = arith.addf %53, %54 : vector<1x384xf32>
    %56 = vector.extract_strided_slice %55 {offsets = [0, 0], sizes = [1, 128], strides = [1, 1]} : vector<1x384xf32> to vector<1x128xf32>
    %57 = vector.extract_strided_slice %55 {offsets = [0, 128], sizes = [1, 128], strides = [1, 1]} : vector<1x384xf32> to vector<1x128xf32>
    %58 = vector.extract_strided_slice %55 {offsets = [0, 256], sizes = [1, 128], strides = [1, 1]} : vector<1x384xf32> to vector<1x128xf32>
    %59 = vector.extract_strided_slice %50 {offsets = [0, 384], sizes = [1, 128], strides = [1, 1]} : vector<1x512xf32> to vector<1x128xf32>
    %60 = arith.mulf %57, %44 : vector<1x128xf32>
    %61 = arith.mulf %56, %59 : vector<1x128xf32>
    %62 = arith.addf %60, %61 : vector<1x128xf32>
    %63 = math.tanh %62 : vector<1x128xf32>
    %64 = arith.mulf %58, %63 : vector<1x128xf32>
    %65 = vector.extract_strided_slice %7 {offsets = [3, 0], sizes = [1, 512], strides = [1, 1]} : vector<8x512xf32> to vector<1x512xf32>
    %cst_16 = arith.constant dense<0.000000e+00> : vector<1x512xf32>
    %66 = tpu.matmul %64, %8, %cst_16 {dimension_numbers = #tpu.dot_dimension_numbers<[1], [0], [0], [1], [0, 0, 1, 1], [], []>} : vector<1x128xf32>, vector<128x512xf32>, vector<1x512xf32> -> vector<1x512xf32>
    %67 = arith.addf %65, %66 : vector<1x512xf32>
    %68 = math.tanh %67 : vector<1x512xf32>
    %69 = vector.extract_strided_slice %68 {offsets = [0, 0], sizes = [1, 384], strides = [1, 1]} : vector<1x512xf32> to vector<1x384xf32>
    %cst_17 = arith.constant 5.000000e-01 : f32
    %70 = vector.broadcast %cst_17 : f32 to vector<1x384xf32>
    %71 = arith.mulf %70, %69 : vector<1x384xf32>
    %cst_18 = arith.constant 5.000000e-01 : f32
    %72 = vector.broadcast %cst_18 : f32 to vector<1x384xf32>
    %73 = arith.addf %71, %72 : vector<1x384xf32>
    %74 = vector.extract_strided_slice %73 {offsets = [0, 0], sizes = [1, 128], strides = [1, 1]} : vector<1x384xf32> to vector<1x128xf32>
    %75 = vector.extract_strided_slice %73 {offsets = [0, 128], sizes = [1, 128], strides = [1, 1]} : vector<1x384xf32> to vector<1x128xf32>
    %76 = vector.extract_strided_slice %73 {offsets = [0, 256], sizes = [1, 128], strides = [1, 1]} : vector<1x384xf32> to vector<1x128xf32>
    %77 = vector.extract_strided_slice %68 {offsets = [0, 384], sizes = [1, 128], strides = [1, 1]} : vector<1x512xf32> to vector<1x128xf32>
    %78 = arith.mulf %75, %62 : vector<1x128xf32>
    %79 = arith.mulf %74, %77 : vector<1x128xf32>
    %80 = arith.addf %78, %79 : vector<1x128xf32>
    %81 = math.tanh %80 : vector<1x128xf32>
    %82 = arith.mulf %76, %81 : vector<1x128xf32>
    %83 = vector.extract_strided_slice %7 {offsets = [4, 0], sizes = [1, 512], strides = [1, 1]} : vector<8x512xf32> to vector<1x512xf32>
    %cst_19 = arith.constant dense<0.000000e+00> : vector<1x512xf32>
    %84 = tpu.matmul %82, %8, %cst_19 {dimension_numbers = #tpu.dot_dimension_numbers<[1], [0], [0], [1], [0, 0, 1, 1], [], []>} : vector<1x128xf32>, vector<128x512xf32>, vector<1x512xf32> -> vector<1x512xf32>
    %85 = arith.addf %83, %84 : vector<1x512xf32>
    %86 = math.tanh %85 : vector<1x512xf32>
    %87 = vector.extract_strided_slice %86 {offsets = [0, 0], sizes = [1, 384], strides = [1, 1]} : vector<1x512xf32> to vector<1x384xf32>
    %cst_20 = arith.constant 5.000000e-01 : f32
    %88 = vector.broadcast %cst_20 : f32 to vector<1x384xf32>
    %89 = arith.mulf %88, %87 : vector<1x384xf32>
    %cst_21 = arith.constant 5.000000e-01 : f32
    %90 = vector.broadcast %cst_21 : f32 to vector<1x384xf32>
    %91 = arith.addf %89, %90 : vector<1x384xf32>
    %92 = vector.extract_strided_slice %91 {offsets = [0, 0], sizes = [1, 128], strides = [1, 1]} : vector<1x384xf32> to vector<1x128xf32>
    %93 = vector.extract_strided_slice %91 {offsets = [0, 128], sizes = [1, 128], strides = [1, 1]} : vector<1x384xf32> to vector<1x128xf32>
    %94 = vector.extract_strided_slice %91 {offsets = [0, 256], sizes = [1, 128], strides = [1, 1]} : vector<1x384xf32> to vector<1x128xf32>
    %95 = vector.extract_strided_slice %86 {offsets = [0, 384], sizes = [1, 128], strides = [1, 1]} : vector<1x512xf32> to vector<1x128xf32>
    %96 = arith.mulf %93, %80 : vector<1x128xf32>
    %97 = arith.mulf %92, %95 : vector<1x128xf32>
    %98 = arith.addf %96, %97 : vector<1x128xf32>
    %99 = math.tanh %98 : vector<1x128xf32>
    %100 = arith.mulf %94, %99 : vector<1x128xf32>
    %101 = vector.extract_strided_slice %7 {offsets = [5, 0], sizes = [1, 512], strides = [1, 1]} : vector<8x512xf32> to vector<1x512xf32>
    %cst_22 = arith.constant dense<0.000000e+00> : vector<1x512xf32>
    %102 = tpu.matmul %100, %8, %cst_22 {dimension_numbers = #tpu.dot_dimension_numbers<[1], [0], [0], [1], [0, 0, 1, 1], [], []>} : vector<1x128xf32>, vector<128x512xf32>, vector<1x512xf32> -> vector<1x512xf32>
    %103 = arith.addf %101, %102 : vector<1x512xf32>
    %104 = math.tanh %103 : vector<1x512xf32>
    %105 = vector.extract_strided_slice %104 {offsets = [0, 0], sizes = [1, 384], strides = [1, 1]} : vector<1x512xf32> to vector<1x384xf32>
    %cst_23 = arith.constant 5.000000e-01 : f32
    %106 = vector.broadcast %cst_23 : f32 to vector<1x384xf32>
    %107 = arith.mulf %106, %105 : vector<1x384xf32>
    %cst_24 = arith.constant 5.000000e-01 : f32
    %108 = vector.broadcast %cst_24 : f32 to vector<1x384xf32>
    %109 = arith.addf %107, %108 : vector<1x384xf32>
    %110 = vector.extract_strided_slice %109 {offsets = [0, 0], sizes = [1, 128], strides = [1, 1]} : vector<1x384xf32> to vector<1x128xf32>
    %111 = vector.extract_strided_slice %109 {offsets = [0, 128], sizes = [1, 128], strides = [1, 1]} : vector<1x384xf32> to vector<1x128xf32>
    %112 = vector.extract_strided_slice %109 {offsets = [0, 256], sizes = [1, 128], strides = [1, 1]} : vector<1x384xf32> to vector<1x128xf32>
    %113 = vector.extract_strided_slice %104 {offsets = [0, 384], sizes = [1, 128], strides = [1, 1]} : vector<1x512xf32> to vector<1x128xf32>
    %114 = arith.mulf %111, %98 : vector<1x128xf32>
    %115 = arith.mulf %110, %113 : vector<1x128xf32>
    %116 = arith.addf %114, %115 : vector<1x128xf32>
    %117 = math.tanh %116 : vector<1x128xf32>
    %118 = arith.mulf %112, %117 : vector<1x128xf32>
    %119 = vector.extract_strided_slice %7 {offsets = [6, 0], sizes = [1, 512], strides = [1, 1]} : vector<8x512xf32> to vector<1x512xf32>
    %cst_25 = arith.constant dense<0.000000e+00> : vector<1x512xf32>
    %120 = tpu.matmul %118, %8, %cst_25 {dimension_numbers = #tpu.dot_dimension_numbers<[1], [0], [0], [1], [0, 0, 1, 1], [], []>} : vector<1x128xf32>, vector<128x512xf32>, vector<1x512xf32> -> vector<1x512xf32>
    %121 = arith.addf %119, %120 : vector<1x512xf32>
    %122 = math.tanh %121 : vector<1x512xf32>
    %123 = vector.extract_strided_slice %122 {offsets = [0, 0], sizes = [1, 384], strides = [1, 1]} : vector<1x512xf32> to vector<1x384xf32>
    %cst_26 = arith.constant 5.000000e-01 : f32
    %124 = vector.broadcast %cst_26 : f32 to vector<1x384xf32>
    %125 = arith.mulf %124, %123 : vector<1x384xf32>
    %cst_27 = arith.constant 5.000000e-01 : f32
    %126 = vector.broadcast %cst_27 : f32 to vector<1x384xf32>
    %127 = arith.addf %125, %126 : vector<1x384xf32>
    %128 = vector.extract_strided_slice %127 {offsets = [0, 0], sizes = [1, 128], strides = [1, 1]} : vector<1x384xf32> to vector<1x128xf32>
    %129 = vector.extract_strided_slice %127 {offsets = [0, 128], sizes = [1, 128], strides = [1, 1]} : vector<1x384xf32> to vector<1x128xf32>
    %130 = vector.extract_strided_slice %127 {offsets = [0, 256], sizes = [1, 128], strides = [1, 1]} : vector<1x384xf32> to vector<1x128xf32>
    %131 = vector.extract_strided_slice %122 {offsets = [0, 384], sizes = [1, 128], strides = [1, 1]} : vector<1x512xf32> to vector<1x128xf32>
    %132 = arith.mulf %129, %116 : vector<1x128xf32>
    %133 = arith.mulf %128, %131 : vector<1x128xf32>
    %134 = arith.addf %132, %133 : vector<1x128xf32>
    %135 = math.tanh %134 : vector<1x128xf32>
    %136 = arith.mulf %130, %135 : vector<1x128xf32>
    %137 = vector.extract_strided_slice %7 {offsets = [7, 0], sizes = [1, 512], strides = [1, 1]} : vector<8x512xf32> to vector<1x512xf32>
    %cst_28 = arith.constant dense<0.000000e+00> : vector<1x512xf32>
    %138 = tpu.matmul %136, %8, %cst_28 {dimension_numbers = #tpu.dot_dimension_numbers<[1], [0], [0], [1], [0, 0, 1, 1], [], []>} : vector<1x128xf32>, vector<128x512xf32>, vector<1x512xf32> -> vector<1x512xf32>
    %139 = arith.addf %137, %138 : vector<1x512xf32>
    %140 = math.tanh %139 : vector<1x512xf32>
    %141 = vector.extract_strided_slice %140 {offsets = [0, 0], sizes = [1, 384], strides = [1, 1]} : vector<1x512xf32> to vector<1x384xf32>
    %cst_29 = arith.constant 5.000000e-01 : f32
    %142 = vector.broadcast %cst_29 : f32 to vector<1x384xf32>
    %143 = arith.mulf %142, %141 : vector<1x384xf32>
    %cst_30 = arith.constant 5.000000e-01 : f32
    %144 = vector.broadcast %cst_30 : f32 to vector<1x384xf32>
    %145 = arith.addf %143, %144 : vector<1x384xf32>
    %146 = vector.extract_strided_slice %145 {offsets = [0, 0], sizes = [1, 128], strides = [1, 1]} : vector<1x384xf32> to vector<1x128xf32>
    %147 = vector.extract_strided_slice %145 {offsets = [0, 128], sizes = [1, 128], strides = [1, 1]} : vector<1x384xf32> to vector<1x128xf32>
    %148 = vector.extract_strided_slice %145 {offsets = [0, 256], sizes = [1, 128], strides = [1, 1]} : vector<1x384xf32> to vector<1x128xf32>
    %149 = vector.extract_strided_slice %140 {offsets = [0, 384], sizes = [1, 128], strides = [1, 1]} : vector<1x512xf32> to vector<1x128xf32>
    %150 = arith.mulf %147, %134 : vector<1x128xf32>
    %151 = arith.mulf %146, %149 : vector<1x128xf32>
    %152 = arith.addf %150, %151 : vector<1x128xf32>
    %153 = math.tanh %152 : vector<1x128xf32>
    %154 = arith.mulf %148, %153 : vector<1x128xf32>
    %c2 = arith.constant 2 : index
    %c0_31 = arith.constant 0 : index
    %155 = vector.load %arg1[%c2, %c0_31] : memref<8x512xf32, #tpu.memory_space<vmem>>, vector<1x128xf32>
    %c3 = arith.constant 3 : index
    %c0_32 = arith.constant 0 : index
    %156 = vector.load %arg1[%c3, %c0_32] : memref<8x512xf32, #tpu.memory_space<vmem>>, vector<1x1xf32>
    %157 = arith.mulf %154, %155 : vector<1x128xf32>
    %cst_33 = arith.constant dense<0.000000e+00> : vector<1xf32>
    %158 = vector.multi_reduction <add>, %157, %cst_33 [1] : vector<1x128xf32> to vector<1xf32>
    %159 = vector.shape_cast %158 : vector<1xf32> to vector<1x1xf32>
    %160 = arith.addf %159, %156 : vector<1x1xf32>
    %c0_34 = arith.constant 0 : index
    %c0_35 = arith.constant 0 : index
    %161 = vector.load %arg3[%c0_34, %c0_35] : memref<1x1xf32, #tpu.memory_space<vmem>>, vector<1x1xf32>
    tpu.vector_store %arg3[%c0_34, %c0_35], %160 {strides = array<i32>} : memref<1x1xf32, #tpu.memory_space<vmem>>, vector<1x1xf32>,
    return
  }
}

</mosaic_0001>

<llo_original>
// kernel: _lstm_pallas.1
$region0: #{_lstm_pallas.1}
  #allocation0 [shape = 'u32[]', space=smem, size = 0x4, offset = 0x4, fixed_abs, tag = 'smem constant byte address 0x4 - core index']
  #allocation1 [shape = 'u32[72,128]{1,0:T(1,128)}', space=vmem, size = 0x9000, scoped, tag = 'internal scratch']
  %s0 = inlined_call_operand.vmem [shape: f32[8,1], index: 0, kind: input, shape index: {}]
  %s1 = inlined_call_operand.hbm [shape: f32[8,512], index: 1, kind: input, shape index: {}]
  %s2 = inlined_call_operand.hbm [shape: f32[128,512], index: 2, kind: input, shape index: {}]
  %s3 = inlined_call_operand.hbm [shape: f32[1,1], index: 3, kind: output, shape index: {}]
  %s4 = sld [smem:[#allocation0]]
  $region30: #{_lstm_pallas.1} parent=0
    _
  %s6 = ssub.s32 1, %s4
  %s7 = scalar_select 0, %s6, %s4
  $region1: #{_lstm_pallas.1} parent=0
    #allocation2 [shape = 'u8[16384]{0}', space=vmem, size = 0x4000, scoped, tag = 'input window, operand 1, single buffered']
    #allocation3 [shape = 's32[1]{0}', space=sflag, size = 0x4, scoped, tag = 'scoped memory for _lstm_pallas.1']
    #allocation4 [shape = 's32[1]{0}', space=sflag, size = 0x4, scoped, tag = 'scoped memory for _lstm_pallas.1']
    #allocation5 [shape = 'u8[262144]{0}', space=vmem, size = 0x40000, scoped, tag = 'input window, operand 2, single buffered']
    #allocation6 [shape = 's32[1]{0}', space=sflag, size = 0x4, scoped, tag = 'scoped memory for _lstm_pallas.1']
    #allocation7 [shape = 'u8[512]{0}', space=vmem, size = 0x400, scoped, tag = 'output window, operand 0, single buffered']
    %8 = vsyncpa [#allocation3], 0
    %9 = vsyncpa [#allocation6], 0
    %10 = vsyncpa [#allocation4], 0
    // Predicated region
    $region2: #{_lstm_pallas.1} parent=1 // pred_check
      _
    $region3: #{_lstm_pallas.1} parent=1 // pred_check_branch
      %12 = sbr.rel (0) target = $region5
    $region4: #{_lstm_pallas.1} parent=1 // pred_region
      _
    $region5: #{_lstm_pallas.1} parent=1 // pred_fallthru
      _
    // Predicated region
    $region6: #{_lstm_pallas.1} parent=1 // pred_check
      _
    $region7: #{_lstm_pallas.1} parent=1 // pred_check_branch
      %14 = sbr.rel (0) target = $region9
    $region8: #{_lstm_pallas.1} parent=1 // pred_region
      %16 = vsyncadd [#allocation3], 0
      %s18 = sshll.u32 %s1, 4
      %s19 = int_to_ptr.hbm [resolvable:$true] %s18
      %s20 = sshll.u32 [#allocation2], 4
      %s21 = int_to_ptr.vmem [resolvable:$true] %s20
      %23 = dma.hbm_to_vmem [thread:$0]  %s19, 512, %s21, [#allocation3]
    $region9: #{_lstm_pallas.1} parent=1 // pred_fallthru
      _
    // Predicated region
    $region10: #{_lstm_pallas.1} parent=1 // pred_check
      _
    $region11: #{_lstm_pallas.1} parent=1 // pred_check_branch
      %25 = sbr.rel (0) target = $region13
    $region12: #{_lstm_pallas.1} parent=1 // pred_region
      %27 = vsyncadd [#allocation6], 0
      %s28 = sshll.u32 %s2, 4
      %s29 = int_to_ptr.hbm [resolvable:$true] %s28
      %s30 = sshll.u32 [#allocation5], 4
      %s31 = int_to_ptr.vmem [resolvable:$true] %s30
      %36 = dma.hbm_to_vmem [thread:$0]  %s29, 8192, %s31, [#allocation6], 512, 512, 32
    $region13: #{_lstm_pallas.1} parent=1 // pred_fallthru
      _
    // Predicated region
    $region14: #{_lstm_pallas.1} parent=1 // pred_check
      _
    $region15: #{_lstm_pallas.1} parent=1 // pred_check_branch
      %38 = sbr.rel (0) target = $region17
    $region16: #{_lstm_pallas.1} parent=1 // pred_region
      %40 = dma.done [#allocation3], 512
    $region17: #{_lstm_pallas.1} parent=1 // pred_fallthru
      _
    // Predicated region
    $region18: #{_lstm_pallas.1} parent=1 // pred_check
      _
    $region19: #{_lstm_pallas.1} parent=1 // pred_check_branch
      %42 = sbr.rel (0) target = $region21
    $region20: #{_lstm_pallas.1} parent=1 // pred_region
      %44 = dma.done [#allocation6], 8192
    $region21: #{_lstm_pallas.1} parent=1 // pred_fallthru
      _
    %v45 = vld [vmem:[%s0] sm:$0xff]
    %v46 = vld [vmem:[#allocation2] ss:$8 sm:$0xf]
    %s47 = scalar_lea.vmem [#allocation2], 1
    %v48 = vld [vmem:[%s47] ss:$8 sm:$0xf]
    %50 = vset.pattern.permute.xlu0 0
    %51 = vperm.xlu0 %50, %v45
    %v52 = vpop.permute.xlu0 %51
    %v55 = vperm.slane %v46, 0
    %v56 = vperm.slane %v46, 1
    %v57 = vperm.slane %v46, 2
    %v58 = vperm.slane %v46, 3
    %v63 = vmul.f32 %v52, %v55
    %v64 = vmul.f32 %v52, %v56
    %v65 = vmul.f32 %v52, %v57
    %v66 = vmul.f32 %v52, %v58
    %v68 = vperm.slane %v48, 0
    %v69 = vperm.slane %v48, 1
    %v70 = vperm.slane %v48, 2
    %v71 = vperm.slane %v48, 3
    %v76 = vadd.f32 %v63, %v68
    %v77 = vadd.f32 %v64, %v69
    %v78 = vadd.f32 %v65, %v70
    %v79 = vadd.f32 %v66, %v71
    %v80 = vld [vmem:[#allocation5] sm:$0xff]
    %v81 = vld [vmem:[#allocation5 + $0x8] sm:$0xff]
    %v82 = vld [vmem:[#allocation5 + $0x10] sm:$0xff]
    %v83 = vld [vmem:[#allocation5 + $0x18] sm:$0xff]
    %v84 = vld [vmem:[#allocation5 + $0x20] sm:$0xff]
    %v85 = vld [vmem:[#allocation5 + $0x28] sm:$0xff]
    %v86 = vld [vmem:[#allocation5 + $0x30] sm:$0xff]
    %v87 = vld [vmem:[#allocation5 + $0x38] sm:$0xff]
    %v88 = vld [vmem:[#allocation5 + $0x40] sm:$0xff]
    %v89 = vld [vmem:[#allocation5 + $0x48] sm:$0xff]
    %v90 = vld [vmem:[#allocation5 + $0x50] sm:$0xff]
    %v91 = vld [vmem:[#allocation5 + $0x58] sm:$0xff]
    %v92 = vld [vmem:[#allocation5 + $0x60] sm:$0xff]
    %v93 = vld [vmem:[#allocation5 + $0x68] sm:$0xff]
    %v94 = vld [vmem:[#allocation5 + $0x70] sm:$0xff]
    %v95 = vld [vmem:[#allocation5 + $0x78] sm:$0xff]
    %v96 = vld [vmem:[#allocation5 + $0x80] sm:$0xff]
    %v97 = vld [vmem:[#allocation5 + $0x88] sm:$0xff]
    %v98 = vld [vmem:[#allocation5 + $0x90] sm:$0xff]
    %v99 = vld [vmem:[#allocation5 + $0x98] sm:$0xff]
    %v100 = vld [vmem:[#allocation5 + $0xa0] sm:$0xff]
    %v101 = vld [vmem:[#allocation5 + $0xa8] sm:$0xff]
    %v102 = vld [vmem:[#allocation5 + $0xb0] sm:$0xff]
    %v103 = vld [vmem:[#allocation5 + $0xb8] sm:$0xff]
    %v104 = vld [vmem:[#allocation5 + $0xc0] sm:$0xff]
    %v105 = vld [vmem:[#allocation5 + $0xc8] sm:$0xff]
    %v106 = vld [vmem:[#allocation5 + $0xd0] sm:$0xff]
    %v107 = vld [vmem:[#allocation5 + $0xd8] sm:$0xff]
    %v108 = vld [vmem:[#allocation5 + $0xe0] sm:$0xff]
    %v109 = vld [vmem:[#allocation5 + $0xe8] sm:$0xff]
    %v110 = vld [vmem:[#allocation5 + $0xf0] sm:$0xff]
    %v111 = vld [vmem:[#allocation5 + $0xf8] sm:$0xff]
    %v112 = vld [vmem:[#allocation5 + $0x100] sm:$0xff]
    %v113 = vld [vmem:[#allocation5 + $0x108] sm:$0xff]
    %v114 = vld [vmem:[#allocation5 + $0x110] sm:$0xff]
    %v115 = vld [vmem:[#allocation5 + $0x118] sm:$0xff]
    %v116 = vld [vmem:[#allocation5 + $0x120] sm:$0xff]
    %v117 = vld [vmem:[#allocation5 + $0x128] sm:$0xff]
    %v118 = vld [vmem:[#allocation5 + $0x130] sm:$0xff]
    %v119 = vld [vmem:[#allocation5 + $0x138] sm:$0xff]
    %v120 = vld [vmem:[#allocation5 + $0x140] sm:$0xff]
    %v121 = vld [vmem:[#allocation5 + $0x148] sm:$0xff]
    %v122 = vld [vmem:[#allocation5 + $0x150] sm:$0xff]
    %v123 = vld [vmem:[#allocation5 + $0x158] sm:$0xff]
    %v124 = vld [vmem:[#allocation5 + $0x160] sm:$0xff]
    %v125 = vld [vmem:[#allocation5 + $0x168] sm:$0xff]
    %v126 = vld [vmem:[#allocation5 + $0x170] sm:$0xff]
    %v127 = vld [vmem:[#allocation5 + $0x178] sm:$0xff]
    %v128 = vld [vmem:[#allocation5 + $0x180] sm:$0xff]
    %v129 = vld [vmem:[#allocation5 + $0x188] sm:$0xff]
    %v130 = vld [vmem:[#allocation5 + $0x190] sm:$0xff]
    %v131 = vld [vmem:[#allocation5 + $0x198] sm:$0xff]
    %v132 = vld [vmem:[#allocation5 + $0x1a0] sm:$0xff]
    %v133 = vld [vmem:[#allocation5 + $0x1a8] sm:$0xff]
    %v134 = vld [vmem:[#allocation5 + $0x1b0] sm:$0xff]
    %v135 = vld [vmem:[#allocation5 + $0x1b8] sm:$0xff]
    %v136 = vld [vmem:[#allocation5 + $0x1c0] sm:$0xff]
    %v137 = vld [vmem:[#allocation5 + $0x1c8] sm:$0xff]
    %v138 = vld [vmem:[#allocation5 + $0x1d0] sm:$0xff]
    %v139 = vld [vmem:[#allocation5 + $0x1d8] sm:$0xff]
    %v140 = vld [vmem:[#allocation5 + $0x1e0] sm:$0xff]
    %v141 = vld [vmem:[#allocation5 + $0x1e8] sm:$0xff]
    %v142 = vld [vmem:[#allocation5 + $0x1f0] sm:$0xff]
    %v143 = vld [vmem:[#allocation5 + $0x1f8] sm:$0xff]
    %144 = vmatpush.msra.mxu0 %v140
    %145 = vmatpush.msra.mxu0 %v136
    %146 = vmatpush.msra.mxu0 %v132
    %147 = vmatpush.msra.mxu0 %v128
    %148 = vmatpush.msra.mxu0 %v124
    %149 = vmatpush.msra.mxu0 %v120
    %150 = vmatpush.msra.mxu0 %v116
    %151 = vmatpush.msra.mxu0 %v112
    %152 = vmatpush.msra.mxu0 %v108
    %153 = vmatpush.msra.mxu0 %v104
    %154 = vmatpush.msra.mxu0 %v100
    %155 = vmatpush.msra.mxu0 %v96
    %156 = vmatpush.msra.mxu0 %v92
    %157 = vmatpush.msra.mxu0 %v88
    %158 = vmatpush.msra.mxu0 %v84
    %159 = vmatpush.msra.mxu0 %v80
    %160 = vmatmul.f32.gmra.mxu0 0.0
    %v161 = vpop.f32.mrf.mxu0
    %v162 = vadd.f32 0.0, %v161
    %163 = vdwg.mxu0
    %164 = vmatpush.msra.mxu0 %v141
    %165 = vmatpush.msra.mxu0 %v137
    %166 = vmatpush.msra.mxu0 %v133
    %167 = vmatpush.msra.mxu0 %v129
    %168 = vmatpush.msra.mxu0 %v125
    %169 = vmatpush.msra.mxu0 %v121
    %170 = vmatpush.msra.mxu0 %v117
    %171 = vmatpush.msra.mxu0 %v113
    %172 = vmatpush.msra.mxu0 %v109
    %173 = vmatpush.msra.mxu0 %v105
    %174 = vmatpush.msra.mxu0 %v101
    %175 = vmatpush.msra.mxu0 %v97
    %176 = vmatpush.msra.mxu0 %v93
    %177 = vmatpush.msra.mxu0 %v89
    %178 = vmatpush.msra.mxu0 %v85
    %179 = vmatpush.msra.mxu0 %v81
    %180 = vmatmul.f32.gmra.mxu0 0.0
    %v181 = vpop.f32.mrf.mxu0
    %v182 = vadd.f32 0.0, %v181
    %183 = vdwg.mxu0
    %184 = vmatpush.msra.mxu0 %v142
    %185 = vmatpush.msra.mxu0 %v138
    %186 = vmatpush.msra.mxu0 %v134
    %187 = vmatpush.msra.mxu0 %v130
    %188 = vmatpush.msra.mxu0 %v126
    %189 = vmatpush.msra.mxu0 %v122
    %190 = vmatpush.msra.mxu0 %v118
    %191 = vmatpush.msra.mxu0 %v114
    %192 = vmatpush.msra.mxu0 %v110
    %193 = vmatpush.msra.mxu0 %v106
    %194 = vmatpush.msra.mxu0 %v102
    %195 = vmatpush.msra.mxu0 %v98
    %196 = vmatpush.msra.mxu0 %v94
    %197 = vmatpush.msra.mxu0 %v90
    %198 = vmatpush.msra.mxu0 %v86
    %199 = vmatpush.msra.mxu0 %v82
    %200 = vmatmul.f32.gmra.mxu0 0.0
    %v201 = vpop.f32.mrf.mxu0
    %v202 = vadd.f32 0.0, %v201
    %203 = vdwg.mxu0
    %204 = vmatpush.msra.mxu0 %v143
    %205 = vmatpush.msra.mxu0 %v139
    %206 = vmatpush.msra.mxu0 %v135
    %207 = vmatpush.msra.mxu0 %v131
    %208 = vmatpush.msra.mxu0 %v127
    %209 = vmatpush.msra.mxu0 %v123
    %210 = vmatpush.msra.mxu0 %v119
    %211 = vmatpush.msra.mxu0 %v115
    %212 = vmatpush.msra.mxu0 %v111
    %213 = vmatpush.msra.mxu0 %v107
    %214 = vmatpush.msra.mxu0 %v103
    %215 = vmatpush.msra.mxu0 %v99
    %216 = vmatpush.msra.mxu0 %v95
    %217 = vmatpush.msra.mxu0 %v91
    %218 = vmatpush.msra.mxu0 %v87
    %219 = vmatpush.msra.mxu0 %v83
    %220 = vmatmul.f32.gmra.mxu0 0.0
    %v221 = vpop.f32.mrf.mxu0
    %v222 = vadd.f32 0.0, %v221
    %223 = vdwg.mxu0
    %v224 = vadd.f32 %v76, %v162
    %v225 = vadd.f32 %v77, %v182
    %v226 = vadd.f32 %v78, %v202
    %v227 = vadd.f32 %v79, %v222
    %v228 = vtanh.pop %v224
    %v229 = vtanh.pop %v225
    %v230 = vtanh.pop %v226
    %v231 = vtanh.pop %v227
    %v232 = vmul.f32 %v228, 0.5
    %v233 = vmul.f32 %v229, 0.5
    %v234 = vmul.f32 %v230, 0.5
    %v235 = vadd.f32 %v232, 0.5
    %v236 = vadd.f32 %v233, 0.5
    %v237 = vadd.f32 %v234, 0.5
    %v238 = vmul.f32 %v236, 0.0
    %v239 = vmul.f32 %v235, %v231
    %v240 = vadd.f32 %v238, %v239
    %v241 = vtanh.pop %v240
    %v242 = vmul.f32 %v237, %v241
    %243 = vmatpush.msra.mxu0 %v140
    %244 = vmatpush.msra.mxu0 %v136
    %245 = vmatpush.msra.mxu0 %v132
    %246 = vmatpush.msra.mxu0 %v128
    %247 = vmatpush.msra.mxu0 %v124
    %248 = vmatpush.msra.mxu0 %v120
    %249 = vmatpush.msra.mxu0 %v116
    %250 = vmatpush.msra.mxu0 %v112
    %251 = vmatpush.msra.mxu0 %v108
    %252 = vmatpush.msra.mxu0 %v104
    %253 = vmatpush.msra.mxu0 %v100
    %254 = vmatpush.msra.mxu0 %v96
    %255 = vmatpush.msra.mxu0 %v92
    %256 = vmatpush.msra.mxu0 %v88
    %257 = vmatpush.msra.mxu0 %v84
    %258 = vmatpush.msra.mxu0 %v80
    %259 = vmatmul.f32.gmra.mxu0 %v242
    %v260 = vpop.f32.mrf.mxu0
    %v261 = vadd.f32 0.0, %v260
    %262 = vdwg.mxu0
    %263 = vmatpush.msra.mxu0 %v141
    %264 = vmatpush.msra.mxu0 %v137
    %265 = vmatpush.msra.mxu0 %v133
    %266 = vmatpush.msra.mxu0 %v129
    %267 = vmatpush.msra.mxu0 %v125
    %268 = vmatpush.msra.mxu0 %v121
    %269 = vmatpush.msra.mxu0 %v117
    %270 = vmatpush.msra.mxu0 %v113
    %271 = vmatpush.msra.mxu0 %v109
    %272 = vmatpush.msra.mxu0 %v105
    %273 = vmatpush.msra.mxu0 %v101
    %274 = vmatpush.msra.mxu0 %v97
    %275 = vmatpush.msra.mxu0 %v93
    %276 = vmatpush.msra.mxu0 %v89
    %277 = vmatpush.msra.mxu0 %v85
    %278 = vmatpush.msra.mxu0 %v81
    %279 = vmatmul.f32.gmra.mxu0 %v242
    %v280 = vpop.f32.mrf.mxu0
    %v281 = vadd.f32 0.0, %v280
    %282 = vdwg.mxu0
    %283 = vmatpush.msra.mxu0 %v142
    %284 = vmatpush.msra.mxu0 %v138
    %285 = vmatpush.msra.mxu0 %v134
    %286 = vmatpush.msra.mxu0 %v130
    %287 = vmatpush.msra.mxu0 %v126
    %288 = vmatpush.msra.mxu0 %v122
    %289 = vmatpush.msra.mxu0 %v118
    %290 = vmatpush.msra.mxu0 %v114
    %291 = vmatpush.msra.mxu0 %v110
    %292 = vmatpush.msra.mxu0 %v106
    %293 = vmatpush.msra.mxu0 %v102
    %294 = vmatpush.msra.mxu0 %v98
    %295 = vmatpush.msra.mxu0 %v94
    %296 = vmatpush.msra.mxu0 %v90
    %297 = vmatpush.msra.mxu0 %v86
    %298 = vmatpush.msra.mxu0 %v82
    %299 = vmatmul.f32.gmra.mxu0 %v242
    %v300 = vpop.f32.mrf.mxu0
    %v301 = vadd.f32 0.0, %v300
    %302 = vdwg.mxu0
    %303 = vmatpush.msra.mxu0 %v143
    %304 = vmatpush.msra.mxu0 %v139
    %305 = vmatpush.msra.mxu0 %v135
    %306 = vmatpush.msra.mxu0 %v131
    %307 = vmatpush.msra.mxu0 %v127
    %308 = vmatpush.msra.mxu0 %v123
    %309 = vmatpush.msra.mxu0 %v119
    %310 = vmatpush.msra.mxu0 %v115
    %311 = vmatpush.msra.mxu0 %v111
    %312 = vmatpush.msra.mxu0 %v107
    %313 = vmatpush.msra.mxu0 %v103
    %314 = vmatpush.msra.mxu0 %v99
    %315 = vmatpush.msra.mxu0 %v95
    %316 = vmatpush.msra.mxu0 %v91
    %317 = vmatpush.msra.mxu0 %v87
    %318 = vmatpush.msra.mxu0 %v83
    %319 = vmatmul.f32.gmra.mxu0 %v242
    %v320 = vpop.f32.mrf.mxu0
    %v321 = vadd.f32 0.0, %v320
    %322 = vdwg.mxu0
    %v327 = vrot.slane %v261, 7
    %v328 = vrot.slane %v281, 7
    %v329 = vrot.slane %v301, 7
    %v330 = vrot.slane %v321, 7
    %v335 = vadd.f32 %v76, %v327
    %v336 = vadd.f32 %v77, %v328
    %v337 = vadd.f32 %v78, %v329
    %v338 = vadd.f32 %v79, %v330
    %v339 = vtanh.pop %v335
    %v340 = vtanh.pop %v336
    %v341 = vtanh.pop %v337
    %v342 = vtanh.pop %v338
    %v343 = vmul.f32 %v339, 0.5
    %v344 = vmul.f32 %v340, 0.5
    %v345 = vmul.f32 %v341, 0.5
    %v346 = vadd.f32 %v343, 0.5
    %v347 = vadd.f32 %v344, 0.5
    %v348 = vadd.f32 %v345, 0.5
    %v350 = vrot.slane %v240, 7
    %v352 = vmul.f32 %v347, %v350
    %v353 = vmul.f32 %v346, %v342
    %v354 = vadd.f32 %v352, %v353
    %v355 = vtanh.pop %v354
    %v356 = vmul.f32 %v348, %v355
    %v358 = vrot.slane %v356, 1
    %360 = vmatpush.msra.mxu0 %v140
    %361 = vmatpush.msra.mxu0 %v136
    %362 = vmatpush.msra.mxu0 %v132
    %363 = vmatpush.msra.mxu0 %v128
    %364 = vmatpush.msra.mxu0 %v124
    %365 = vmatpush.msra.mxu0 %v120
    %366 = vmatpush.msra.mxu0 %v116
    %367 = vmatpush.msra.mxu0 %v112
    %368 = vmatpush.msra.mxu0 %v108
    %369 = vmatpush.msra.mxu0 %v104
    %370 = vmatpush.msra.mxu0 %v100
    %371 = vmatpush.msra.mxu0 %v96
    %372 = vmatpush.msra.mxu0 %v92
    %373 = vmatpush.msra.mxu0 %v88
    %374 = vmatpush.msra.mxu0 %v84
    %375 = vmatpush.msra.mxu0 %v80
    %376 = vmatmul.f32.gmra.mxu0 %v358
    %v377 = vpop.f32.mrf.mxu0
    %v378 = vadd.f32 0.0, %v377
    %379 = vdwg.mxu0
    %380 = vmatpush.msra.mxu0 %v141
    %381 = vmatpush.msra.mxu0 %v137
    %382 = vmatpush.msra.mxu0 %v133
    %383 = vmatpush.msra.mxu0 %v129
    %384 = vmatpush.msra.mxu0 %v125
    %385 = vmatpush.msra.mxu0 %v121
    %386 = vmatpush.msra.mxu0 %v117
    %387 = vmatpush.msra.mxu0 %v113
    %388 = vmatpush.msra.mxu0 %v109
    %389 = vmatpush.msra.mxu0 %v105
    %390 = vmatpush.msra.mxu0 %v101
    %391 = vmatpush.msra.mxu0 %v97
    %392 = vmatpush.msra.mxu0 %v93
    %393 = vmatpush.msra.mxu0 %v89
    %394 = vmatpush.msra.mxu0 %v85
    %395 = vmatpush.msra.mxu0 %v81
    %396 = vmatmul.f32.gmra.mxu0 %v358
    %v397 = vpop.f32.mrf.mxu0
    %v398 = vadd.f32 0.0, %v397
    %399 = vdwg.mxu0
    %400 = vmatpush.msra.mxu0 %v142
    %401 = vmatpush.msra.mxu0 %v138
    %402 = vmatpush.msra.mxu0 %v134
    %403 = vmatpush.msra.mxu0 %v130
    %404 = vmatpush.msra.mxu0 %v126
    %405 = vmatpush.msra.mxu0 %v122
    %406 = vmatpush.msra.mxu0 %v118
    %407 = vmatpush.msra.mxu0 %v114
    %408 = vmatpush.msra.mxu0 %v110
    %409 = vmatpush.msra.mxu0 %v106
    %410 = vmatpush.msra.mxu0 %v102
    %411 = vmatpush.msra.mxu0 %v98
    %412 = vmatpush.msra.mxu0 %v94
    %413 = vmatpush.msra.mxu0 %v90
    %414 = vmatpush.msra.mxu0 %v86
    %415 = vmatpush.msra.mxu0 %v82
    %416 = vmatmul.f32.gmra.mxu0 %v358
    %v417 = vpop.f32.mrf.mxu0
    %v418 = vadd.f32 0.0, %v417
    %419 = vdwg.mxu0
    %420 = vmatpush.msra.mxu0 %v143
    %421 = vmatpush.msra.mxu0 %v139
    %422 = vmatpush.msra.mxu0 %v135
    %423 = vmatpush.msra.mxu0 %v131
    %424 = vmatpush.msra.mxu0 %v127
    %425 = vmatpush.msra.mxu0 %v123
    %426 = vmatpush.msra.mxu0 %v119
    %427 = vmatpush.msra.mxu0 %v115
    %428 = vmatpush.msra.mxu0 %v111
    %429 = vmatpush.msra.mxu0 %v107
    %430 = vmatpush.msra.mxu0 %v103
    %431 = vmatpush.msra.mxu0 %v99
    %432 = vmatpush.msra.mxu0 %v95
    %433 = vmatpush.msra.mxu0 %v91
    %434 = vmatpush.msra.mxu0 %v87
    %435 = vmatpush.msra.mxu0 %v83
    %436 = vmatmul.f32.gmra.mxu0 %v358
    %v437 = vpop.f32.mrf.mxu0
    %v438 = vadd.f32 0.0, %v437
    %439 = vdwg.mxu0
    %v444 = vrot.slane %v378, 6
    %v445 = vrot.slane %v398, 6
    %v446 = vrot.slane %v418, 6
    %v447 = vrot.slane %v438, 6
    %v452 = vadd.f32 %v76, %v444
    %v453 = vadd.f32 %v77, %v445
    %v454 = vadd.f32 %v78, %v446
    %v455 = vadd.f32 %v79, %v447
    %v456 = vtanh.pop %v452
    %v457 = vtanh.pop %v453
    %v458 = vtanh.pop %v454
    %v459 = vtanh.pop %v455
    %v460 = vmul.f32 %v456, 0.5
    %v461 = vmul.f32 %v457, 0.5
    %v462 = vmul.f32 %v458, 0.5
    %v463 = vadd.f32 %v460, 0.5
    %v464 = vadd.f32 %v461, 0.5
    %v465 = vadd.f32 %v462, 0.5
    %v467 = vrot.slane %v354, 7
    %v469 = vmul.f32 %v464, %v467
    %v470 = vmul.f32 %v463, %v459
    %v471 = vadd.f32 %v469, %v470
    %v472 = vtanh.pop %v471
    %v473 = vmul.f32 %v465, %v472
    %v475 = vrot.slane %v473, 2
    %477 = vmatpush.msra.mxu0 %v140
    %478 = vmatpush.msra.mxu0 %v136
    %479 = vmatpush.msra.mxu0 %v132
    %480 = vmatpush.msra.mxu0 %v128
    %481 = vmatpush.msra.mxu0 %v124
    %482 = vmatpush.msra.mxu0 %v120
    %483 = vmatpush.msra.mxu0 %v116
    %484 = vmatpush.msra.mxu0 %v112
    %485 = vmatpush.msra.mxu0 %v108
    %486 = vmatpush.msra.mxu0 %v104
    %487 = vmatpush.msra.mxu0 %v100
    %488 = vmatpush.msra.mxu0 %v96
    %489 = vmatpush.msra.mxu0 %v92
    %490 = vmatpush.msra.mxu0 %v88
    %491 = vmatpush.msra.mxu0 %v84
    %492 = vmatpush.msra.mxu0 %v80
    %493 = vmatmul.f32.gmra.mxu0 %v475
    %v494 = vpop.f32.mrf.mxu0
    %v495 = vadd.f32 0.0, %v494
    %496 = vdwg.mxu0
    %497 = vmatpush.msra.mxu0 %v141
    %498 = vmatpush.msra.mxu0 %v137
    %499 = vmatpush.msra.mxu0 %v133
    %500 = vmatpush.msra.mxu0 %v129
    %501 = vmatpush.msra.mxu0 %v125
    %502 = vmatpush.msra.mxu0 %v121
    %503 = vmatpush.msra.mxu0 %v117
    %504 = vmatpush.msra.mxu0 %v113
    %505 = vmatpush.msra.mxu0 %v109
    %506 = vmatpush.msra.mxu0 %v105
    %507 = vmatpush.msra.mxu0 %v101
    %508 = vmatpush.msra.mxu0 %v97
    %509 = vmatpush.msra.mxu0 %v93
    %510 = vmatpush.msra.mxu0 %v89
    %511 = vmatpush.msra.mxu0 %v85
    %512 = vmatpush.msra.mxu0 %v81
    %513 = vmatmul.f32.gmra.mxu0 %v475
    %v514 = vpop.f32.mrf.mxu0
    %v515 = vadd.f32 0.0, %v514
    %516 = vdwg.mxu0
    %517 = vmatpush.msra.mxu0 %v142
    %518 = vmatpush.msra.mxu0 %v138
    %519 = vmatpush.msra.mxu0 %v134
    %520 = vmatpush.msra.mxu0 %v130
    %521 = vmatpush.msra.mxu0 %v126
    %522 = vmatpush.msra.mxu0 %v122
    %523 = vmatpush.msra.mxu0 %v118
    %524 = vmatpush.msra.mxu0 %v114
    %525 = vmatpush.msra.mxu0 %v110
    %526 = vmatpush.msra.mxu0 %v106
    %527 = vmatpush.msra.mxu0 %v102
    %528 = vmatpush.msra.mxu0 %v98
    %529 = vmatpush.msra.mxu0 %v94
    %530 = vmatpush.msra.mxu0 %v90
    %531 = vmatpush.msra.mxu0 %v86
    %532 = vmatpush.msra.mxu0 %v82
    %533 = vmatmul.f32.gmra.mxu0 %v475
    %v534 = vpop.f32.mrf.mxu0
    %v535 = vadd.f32 0.0, %v534
    %536 = vdwg.mxu0
    %537 = vmatpush.msra.mxu0 %v143
    %538 = vmatpush.msra.mxu0 %v139
    %539 = vmatpush.msra.mxu0 %v135
    %540 = vmatpush.msra.mxu0 %v131
    %541 = vmatpush.msra.mxu0 %v127
    %542 = vmatpush.msra.mxu0 %v123
    %543 = vmatpush.msra.mxu0 %v119
    %544 = vmatpush.msra.mxu0 %v115
    %545 = vmatpush.msra.mxu0 %v111
    %546 = vmatpush.msra.mxu0 %v107
    %547 = vmatpush.msra.mxu0 %v103
    %548 = vmatpush.msra.mxu0 %v99
    %549 = vmatpush.msra.mxu0 %v95
    %550 = vmatpush.msra.mxu0 %v91
    %551 = vmatpush.msra.mxu0 %v87
    %552 = vmatpush.msra.mxu0 %v83
    %553 = vmatmul.f32.gmra.mxu0 %v475
    %v554 = vpop.f32.mrf.mxu0
    %v555 = vadd.f32 0.0, %v554
    %556 = vdwg.mxu0
    %v561 = vrot.slane %v495, 5
    %v562 = vrot.slane %v515, 5
    %v563 = vrot.slane %v535, 5
    %v564 = vrot.slane %v555, 5
    %v569 = vadd.f32 %v76, %v561
    %v570 = vadd.f32 %v77, %v562
    %v571 = vadd.f32 %v78, %v563
    %v572 = vadd.f32 %v79, %v564
    %v573 = vtanh.pop %v569
    %v574 = vtanh.pop %v570
    %v575 = vtanh.pop %v571
    %v576 = vtanh.pop %v572
    %v577 = vmul.f32 %v573, 0.5
    %v578 = vmul.f32 %v574, 0.5
    %v579 = vmul.f32 %v575, 0.5
    %v580 = vadd.f32 %v577, 0.5
    %v581 = vadd.f32 %v578, 0.5
    %v582 = vadd.f32 %v579, 0.5
    %v584 = vrot.slane %v471, 7
    %v586 = vmul.f32 %v581, %v584
    %v587 = vmul.f32 %v580, %v576
    %v588 = vadd.f32 %v586, %v587
    %v589 = vtanh.pop %v588
    %v590 = vmul.f32 %v582, %v589
    %v592 = vrot.slane %v590, 3
    %594 = vmatpush.msra.mxu0 %v140
    %595 = vmatpush.msra.mxu0 %v136
    %596 = vmatpush.msra.mxu0 %v132
    %597 = vmatpush.msra.mxu0 %v128
    %598 = vmatpush.msra.mxu0 %v124
    %599 = vmatpush.msra.mxu0 %v120
    %600 = vmatpush.msra.mxu0 %v116
    %601 = vmatpush.msra.mxu0 %v112
    %602 = vmatpush.msra.mxu0 %v108
    %603 = vmatpush.msra.mxu0 %v104
    %604 = vmatpush.msra.mxu0 %v100
    %605 = vmatpush.msra.mxu0 %v96
    %606 = vmatpush.msra.mxu0 %v92
    %607 = vmatpush.msra.mxu0 %v88
    %608 = vmatpush.msra.mxu0 %v84
    %609 = vmatpush.msra.mxu0 %v80
    %610 = vmatmul.f32.gmra.mxu0 %v592
    %v611 = vpop.f32.mrf.mxu0
    %v612 = vadd.f32 0.0, %v611
    %613 = vdwg.mxu0
    %614 = vmatpush.msra.mxu0 %v141
    %615 = vmatpush.msra.mxu0 %v137
    %616 = vmatpush.msra.mxu0 %v133
    %617 = vmatpush.msra.mxu0 %v129
    %618 = vmatpush.msra.mxu0 %v125
    %619 = vmatpush.msra.mxu0 %v121
    %620 = vmatpush.msra.mxu0 %v117
    %621 = vmatpush.msra.mxu0 %v113
    %622 = vmatpush.msra.mxu0 %v109
    %623 = vmatpush.msra.mxu0 %v105
    %624 = vmatpush.msra.mxu0 %v101
    %625 = vmatpush.msra.mxu0 %v97
    %626 = vmatpush.msra.mxu0 %v93
    %627 = vmatpush.msra.mxu0 %v89
    %628 = vmatpush.msra.mxu0 %v85
    %629 = vmatpush.msra.mxu0 %v81
    %630 = vmatmul.f32.gmra.mxu0 %v592
    %v631 = vpop.f32.mrf.mxu0
    %v632 = vadd.f32 0.0, %v631
    %633 = vdwg.mxu0
    %634 = vmatpush.msra.mxu0 %v142
    %635 = vmatpush.msra.mxu0 %v138
    %636 = vmatpush.msra.mxu0 %v134
    %637 = vmatpush.msra.mxu0 %v130
    %638 = vmatpush.msra.mxu0 %v126
    %639 = vmatpush.msra.mxu0 %v122
    %640 = vmatpush.msra.mxu0 %v118
    %641 = vmatpush.msra.mxu0 %v114
    %642 = vmatpush.msra.mxu0 %v110
    %643 = vmatpush.msra.mxu0 %v106
    %644 = vmatpush.msra.mxu0 %v102
    %645 = vmatpush.msra.mxu0 %v98
    %646 = vmatpush.msra.mxu0 %v94
    %647 = vmatpush.msra.mxu0 %v90
    %648 = vmatpush.msra.mxu0 %v86
    %649 = vmatpush.msra.mxu0 %v82
    %650 = vmatmul.f32.gmra.mxu0 %v592
    %v651 = vpop.f32.mrf.mxu0
    %v652 = vadd.f32 0.0, %v651
    %653 = vdwg.mxu0
    %654 = vmatpush.msra.mxu0 %v143
    %655 = vmatpush.msra.mxu0 %v139
    %656 = vmatpush.msra.mxu0 %v135
    %657 = vmatpush.msra.mxu0 %v131
    %658 = vmatpush.msra.mxu0 %v127
    %659 = vmatpush.msra.mxu0 %v123
    %660 = vmatpush.msra.mxu0 %v119
    %661 = vmatpush.msra.mxu0 %v115
    %662 = vmatpush.msra.mxu0 %v111
    %663 = vmatpush.msra.mxu0 %v107
    %664 = vmatpush.msra.mxu0 %v103
    %665 = vmatpush.msra.mxu0 %v99
    %666 = vmatpush.msra.mxu0 %v95
    %667 = vmatpush.msra.mxu0 %v91
    %668 = vmatpush.msra.mxu0 %v87
    %669 = vmatpush.msra.mxu0 %v83
    %670 = vmatmul.f32.gmra.mxu0 %v592
    %v671 = vpop.f32.mrf.mxu0
    %v672 = vadd.f32 0.0, %v671
    %673 = vdwg.mxu0
    %v678 = vrot.slane %v612, 4
    %v679 = vrot.slane %v632, 4
    %v680 = vrot.slane %v652, 4
    %v681 = vrot.slane %v672, 4
    %v686 = vadd.f32 %v76, %v678
    %v687 = vadd.f32 %v77, %v679
    %v688 = vadd.f32 %v78, %v680
    %v689 = vadd.f32 %v79, %v681
    %v690 = vtanh.pop %v686
    %v691 = vtanh.pop %v687
    %v692 = vtanh.pop %v688
    %v693 = vtanh.pop %v689
    %v694 = vmul.f32 %v690, 0.5
    %v695 = vmul.f32 %v691, 0.5
    %v696 = vmul.f32 %v692, 0.5
    %v697 = vadd.f32 %v694, 0.5
    %v698 = vadd.f32 %v695, 0.5
    %v699 = vadd.f32 %v696, 0.5
    %v701 = vrot.slane %v588, 7
    %v703 = vmul.f32 %v698, %v701
    %v704 = vmul.f32 %v697, %v693
    %v705 = vadd.f32 %v703, %v704
    %v706 = vtanh.pop %v705
    %v707 = vmul.f32 %v699, %v706
    %v709 = vrot.slane %v707, 4
    %711 = vmatpush.msra.mxu0 %v140
    %712 = vmatpush.msra.mxu0 %v136
    %713 = vmatpush.msra.mxu0 %v132
    %714 = vmatpush.msra.mxu0 %v128
    %715 = vmatpush.msra.mxu0 %v124
    %716 = vmatpush.msra.mxu0 %v120
    %717 = vmatpush.msra.mxu0 %v116
    %718 = vmatpush.msra.mxu0 %v112
    %719 = vmatpush.msra.mxu0 %v108
    %720 = vmatpush.msra.mxu0 %v104
    %721 = vmatpush.msra.mxu0 %v100
    %722 = vmatpush.msra.mxu0 %v96
    %723 = vmatpush.msra.mxu0 %v92
    %724 = vmatpush.msra.mxu0 %v88
    %725 = vmatpush.msra.mxu0 %v84
    %726 = vmatpush.msra.mxu0 %v80
    %727 = vmatmul.f32.gmra.mxu0 %v709
    %v728 = vpop.f32.mrf.mxu0
    %v729 = vadd.f32 0.0, %v728
    %730 = vdwg.mxu0
    %731 = vmatpush.msra.mxu0 %v141
    %732 = vmatpush.msra.mxu0 %v137
    %733 = vmatpush.msra.mxu0 %v133
    %734 = vmatpush.msra.mxu0 %v129
    %735 = vmatpush.msra.mxu0 %v125
    %736 = vmatpush.msra.mxu0 %v121
    %737 = vmatpush.msra.mxu0 %v117
    %738 = vmatpush.msra.mxu0 %v113
    %739 = vmatpush.msra.mxu0 %v109
    %740 = vmatpush.msra.mxu0 %v105
    %741 = vmatpush.msra.mxu0 %v101
    %742 = vmatpush.msra.mxu0 %v97
    %743 = vmatpush.msra.mxu0 %v93
    %744 = vmatpush.msra.mxu0 %v89
    %745 = vmatpush.msra.mxu0 %v85
    %746 = vmatpush.msra.mxu0 %v81
    %747 = vmatmul.f32.gmra.mxu0 %v709
    %v748 = vpop.f32.mrf.mxu0
    %v749 = vadd.f32 0.0, %v748
    %750 = vdwg.mxu0
    %751 = vmatpush.msra.mxu0 %v142
    %752 = vmatpush.msra.mxu0 %v138
    %753 = vmatpush.msra.mxu0 %v134
    %754 = vmatpush.msra.mxu0 %v130
    %755 = vmatpush.msra.mxu0 %v126
    %756 = vmatpush.msra.mxu0 %v122
    %757 = vmatpush.msra.mxu0 %v118
    %758 = vmatpush.msra.mxu0 %v114
    %759 = vmatpush.msra.mxu0 %v110
    %760 = vmatpush.msra.mxu0 %v106
    %761 = vmatpush.msra.mxu0 %v102
    %762 = vmatpush.msra.mxu0 %v98
    %763 = vmatpush.msra.mxu0 %v94
    %764 = vmatpush.msra.mxu0 %v90
    %765 = vmatpush.msra.mxu0 %v86
    %766 = vmatpush.msra.mxu0 %v82
    %767 = vmatmul.f32.gmra.mxu0 %v709
    %v768 = vpop.f32.mrf.mxu0
    %v769 = vadd.f32 0.0, %v768
    %770 = vdwg.mxu0
    %771 = vmatpush.msra.mxu0 %v143
    %772 = vmatpush.msra.mxu0 %v139
    %773 = vmatpush.msra.mxu0 %v135
    %774 = vmatpush.msra.mxu0 %v131
    %775 = vmatpush.msra.mxu0 %v127
    %776 = vmatpush.msra.mxu0 %v123
    %777 = vmatpush.msra.mxu0 %v119
    %778 = vmatpush.msra.mxu0 %v115
    %779 = vmatpush.msra.mxu0 %v111
    %780 = vmatpush.msra.mxu0 %v107
    %781 = vmatpush.msra.mxu0 %v103
    %782 = vmatpush.msra.mxu0 %v99
    %783 = vmatpush.msra.mxu0 %v95
    %784 = vmatpush.msra.mxu0 %v91
    %785 = vmatpush.msra.mxu0 %v87
    %786 = vmatpush.msra.mxu0 %v83
    %787 = vmatmul.f32.gmra.mxu0 %v709
    %v788 = vpop.f32.mrf.mxu0
    %v789 = vadd.f32 0.0, %v788
    %790 = vdwg.mxu0
    %v795 = vrot.slane %v729, 3
    %v796 = vrot.slane %v749, 3
    %v797 = vrot.slane %v769, 3
    %v798 = vrot.slane %v789, 3
    %v803 = vadd.f32 %v76, %v795
    %v804 = vadd.f32 %v77, %v796
    %v805 = vadd.f32 %v78, %v797
    %v806 = vadd.f32 %v79, %v798
    %v807 = vtanh.pop %v803
    %v808 = vtanh.pop %v804
    %v809 = vtanh.pop %v805
    %v810 = vtanh.pop %v806
    %v811 = vmul.f32 %v807, 0.5
    %v812 = vmul.f32 %v808, 0.5
    %v813 = vmul.f32 %v809, 0.5
    %v814 = vadd.f32 %v811, 0.5
    %v815 = vadd.f32 %v812, 0.5
    %v816 = vadd.f32 %v813, 0.5
    %v818 = vrot.slane %v705, 7
    %v820 = vmul.f32 %v815, %v818
    %v821 = vmul.f32 %v814, %v810
    %v822 = vadd.f32 %v820, %v821
    %v823 = vtanh.pop %v822
    %v824 = vmul.f32 %v816, %v823
    %v826 = vrot.slane %v824, 5
    %828 = vmatpush.msra.mxu0 %v140
    %829 = vmatpush.msra.mxu0 %v136
    %830 = vmatpush.msra.mxu0 %v132
    %831 = vmatpush.msra.mxu0 %v128
    %832 = vmatpush.msra.mxu0 %v124
    %833 = vmatpush.msra.mxu0 %v120
    %834 = vmatpush.msra.mxu0 %v116
    %835 = vmatpush.msra.mxu0 %v112
    %836 = vmatpush.msra.mxu0 %v108
    %837 = vmatpush.msra.mxu0 %v104
    %838 = vmatpush.msra.mxu0 %v100
    %839 = vmatpush.msra.mxu0 %v96
    %840 = vmatpush.msra.mxu0 %v92
    %841 = vmatpush.msra.mxu0 %v88
    %842 = vmatpush.msra.mxu0 %v84
    %843 = vmatpush.msra.mxu0 %v80
    %844 = vmatmul.f32.gmra.mxu0 %v826
    %v845 = vpop.f32.mrf.mxu0
    %v846 = vadd.f32 0.0, %v845
    %847 = vdwg.mxu0
    %848 = vmatpush.msra.mxu0 %v141
    %849 = vmatpush.msra.mxu0 %v137
    %850 = vmatpush.msra.mxu0 %v133
    %851 = vmatpush.msra.mxu0 %v129
    %852 = vmatpush.msra.mxu0 %v125
    %853 = vmatpush.msra.mxu0 %v121
    %854 = vmatpush.msra.mxu0 %v117
    %855 = vmatpush.msra.mxu0 %v113
    %856 = vmatpush.msra.mxu0 %v109
    %857 = vmatpush.msra.mxu0 %v105
    %858 = vmatpush.msra.mxu0 %v101
    %859 = vmatpush.msra.mxu0 %v97
    %860 = vmatpush.msra.mxu0 %v93
    %861 = vmatpush.msra.mxu0 %v89
    %862 = vmatpush.msra.mxu0 %v85
    %863 = vmatpush.msra.mxu0 %v81
    %864 = vmatmul.f32.gmra.mxu0 %v826
    %v865 = vpop.f32.mrf.mxu0
    %v866 = vadd.f32 0.0, %v865
    %867 = vdwg.mxu0
    %868 = vmatpush.msra.mxu0 %v142
    %869 = vmatpush.msra.mxu0 %v138
    %870 = vmatpush.msra.mxu0 %v134
    %871 = vmatpush.msra.mxu0 %v130
    %872 = vmatpush.msra.mxu0 %v126
    %873 = vmatpush.msra.mxu0 %v122
    %874 = vmatpush.msra.mxu0 %v118
    %875 = vmatpush.msra.mxu0 %v114
    %876 = vmatpush.msra.mxu0 %v110
    %877 = vmatpush.msra.mxu0 %v106
    %878 = vmatpush.msra.mxu0 %v102
    %879 = vmatpush.msra.mxu0 %v98
    %880 = vmatpush.msra.mxu0 %v94
    %881 = vmatpush.msra.mxu0 %v90
    %882 = vmatpush.msra.mxu0 %v86
    %883 = vmatpush.msra.mxu0 %v82
    %884 = vmatmul.f32.gmra.mxu0 %v826
    %v885 = vpop.f32.mrf.mxu0
    %v886 = vadd.f32 0.0, %v885
    %887 = vdwg.mxu0
    %888 = vmatpush.msra.mxu0 %v143
    %889 = vmatpush.msra.mxu0 %v139
    %890 = vmatpush.msra.mxu0 %v135
    %891 = vmatpush.msra.mxu0 %v131
    %892 = vmatpush.msra.mxu0 %v127
    %893 = vmatpush.msra.mxu0 %v123
    %894 = vmatpush.msra.mxu0 %v119
    %895 = vmatpush.msra.mxu0 %v115
    %896 = vmatpush.msra.mxu0 %v111
    %897 = vmatpush.msra.mxu0 %v107
    %898 = vmatpush.msra.mxu0 %v103
    %899 = vmatpush.msra.mxu0 %v99
    %900 = vmatpush.msra.mxu0 %v95
    %901 = vmatpush.msra.mxu0 %v91
    %902 = vmatpush.msra.mxu0 %v87
    %903 = vmatpush.msra.mxu0 %v83
    %904 = vmatmul.f32.gmra.mxu0 %v826
    %v905 = vpop.f32.mrf.mxu0
    %v906 = vadd.f32 0.0, %v905
    %907 = vdwg.mxu0
    %v912 = vrot.slane %v846, 2
    %v913 = vrot.slane %v866, 2
    %v914 = vrot.slane %v886, 2
    %v915 = vrot.slane %v906, 2
    %v920 = vadd.f32 %v76, %v912
    %v921 = vadd.f32 %v77, %v913
    %v922 = vadd.f32 %v78, %v914
    %v923 = vadd.f32 %v79, %v915
    %v924 = vtanh.pop %v920
    %v925 = vtanh.pop %v921
    %v926 = vtanh.pop %v922
    %v927 = vtanh.pop %v923
    %v928 = vmul.f32 %v924, 0.5
    %v929 = vmul.f32 %v925, 0.5
    %v930 = vmul.f32 %v926, 0.5
    %v931 = vadd.f32 %v928, 0.5
    %v932 = vadd.f32 %v929, 0.5
    %v933 = vadd.f32 %v930, 0.5
    %v935 = vrot.slane %v822, 7
    %v937 = vmul.f32 %v932, %v935
    %v938 = vmul.f32 %v931, %v927
    %v939 = vadd.f32 %v937, %v938
    %v940 = vtanh.pop %v939
    %v941 = vmul.f32 %v933, %v940
    %v943 = vrot.slane %v941, 6
    %945 = vmatpush.msra.mxu0 %v140
    %946 = vmatpush.msra.mxu0 %v136
    %947 = vmatpush.msra.mxu0 %v132
    %948 = vmatpush.msra.mxu0 %v128
    %949 = vmatpush.msra.mxu0 %v124
    %950 = vmatpush.msra.mxu0 %v120
    %951 = vmatpush.msra.mxu0 %v116
    %952 = vmatpush.msra.mxu0 %v112
    %953 = vmatpush.msra.mxu0 %v108
    %954 = vmatpush.msra.mxu0 %v104
    %955 = vmatpush.msra.mxu0 %v100
    %956 = vmatpush.msra.mxu0 %v96
    %957 = vmatpush.msra.mxu0 %v92
    %958 = vmatpush.msra.mxu0 %v88
    %959 = vmatpush.msra.mxu0 %v84
    %960 = vmatpush.msra.mxu0 %v80
    %961 = vmatmul.f32.gmra.mxu0 %v943
    %v962 = vpop.f32.mrf.mxu0
    %v963 = vadd.f32 0.0, %v962
    %964 = vdwg.mxu0
    %965 = vmatpush.msra.mxu0 %v141
    %966 = vmatpush.msra.mxu0 %v137
    %967 = vmatpush.msra.mxu0 %v133
    %968 = vmatpush.msra.mxu0 %v129
    %969 = vmatpush.msra.mxu0 %v125
    %970 = vmatpush.msra.mxu0 %v121
    %971 = vmatpush.msra.mxu0 %v117
    %972 = vmatpush.msra.mxu0 %v113
    %973 = vmatpush.msra.mxu0 %v109
    %974 = vmatpush.msra.mxu0 %v105
    %975 = vmatpush.msra.mxu0 %v101
    %976 = vmatpush.msra.mxu0 %v97
    %977 = vmatpush.msra.mxu0 %v93
    %978 = vmatpush.msra.mxu0 %v89
    %979 = vmatpush.msra.mxu0 %v85
    %980 = vmatpush.msra.mxu0 %v81
    %981 = vmatmul.f32.gmra.mxu0 %v943
    %v982 = vpop.f32.mrf.mxu0
    %v983 = vadd.f32 0.0, %v982
    %984 = vdwg.mxu0
    %985 = vmatpush.msra.mxu0 %v142
    %986 = vmatpush.msra.mxu0 %v138
    %987 = vmatpush.msra.mxu0 %v134
    %988 = vmatpush.msra.mxu0 %v130
    %989 = vmatpush.msra.mxu0 %v126
    %990 = vmatpush.msra.mxu0 %v122
    %991 = vmatpush.msra.mxu0 %v118
    %992 = vmatpush.msra.mxu0 %v114
    %993 = vmatpush.msra.mxu0 %v110
    %994 = vmatpush.msra.mxu0 %v106
    %995 = vmatpush.msra.mxu0 %v102
    %996 = vmatpush.msra.mxu0 %v98
    %997 = vmatpush.msra.mxu0 %v94
    %998 = vmatpush.msra.mxu0 %v90
    %999 = vmatpush.msra.mxu0 %v86
    %1000 = vmatpush.msra.mxu0 %v82
    %1001 = vmatmul.f32.gmra.mxu0 %v943
    %v1002 = vpop.f32.mrf.mxu0
    %v1003 = vadd.f32 0.0, %v1002
    %1004 = vdwg.mxu0
    %1005 = vmatpush.msra.mxu0 %v143
    %1006 = vmatpush.msra.mxu0 %v139
    %1007 = vmatpush.msra.mxu0 %v135
    %1008 = vmatpush.msra.mxu0 %v131
    %1009 = vmatpush.msra.mxu0 %v127
    %1010 = vmatpush.msra.mxu0 %v123
    %1011 = vmatpush.msra.mxu0 %v119
    %1012 = vmatpush.msra.mxu0 %v115
    %1013 = vmatpush.msra.mxu0 %v111
    %1014 = vmatpush.msra.mxu0 %v107
    %1015 = vmatpush.msra.mxu0 %v103
    %1016 = vmatpush.msra.mxu0 %v99
    %1017 = vmatpush.msra.mxu0 %v95
    %1018 = vmatpush.msra.mxu0 %v91
    %1019 = vmatpush.msra.mxu0 %v87
    %1020 = vmatpush.msra.mxu0 %v83
    %1021 = vmatmul.f32.gmra.mxu0 %v943
    %v1022 = vpop.f32.mrf.mxu0
    %v1023 = vadd.f32 0.0, %v1022
    %1024 = vdwg.mxu0
    %v1029 = vrot.slane %v963, 1
    %v1030 = vrot.slane %v983, 1
    %v1031 = vrot.slane %v1003, 1
    %v1032 = vrot.slane %v1023, 1
    %v1037 = vadd.f32 %v76, %v1029
    %v1038 = vadd.f32 %v77, %v1030
    %v1039 = vadd.f32 %v78, %v1031
    %v1040 = vadd.f32 %v79, %v1032
    %v1041 = vtanh.pop %v1037
    %v1042 = vtanh.pop %v1038
    %v1043 = vtanh.pop %v1039
    %v1044 = vtanh.pop %v1040
    %v1045 = vmul.f32 %v1041, 0.5
    %v1046 = vmul.f32 %v1042, 0.5
    %v1047 = vmul.f32 %v1043, 0.5
    %v1048 = vadd.f32 %v1045, 0.5
    %v1049 = vadd.f32 %v1046, 0.5
    %v1050 = vadd.f32 %v1047, 0.5
    %v1052 = vrot.slane %v939, 7
    %v1054 = vmul.f32 %v1049, %v1052
    %v1055 = vmul.f32 %v1048, %v1044
    %v1056 = vadd.f32 %v1054, %v1055
    %v1057 = vtanh.pop %v1056
    %v1058 = vmul.f32 %v1050, %v1057
    %v1059 = vld [vmem:[#allocation2 + $0x2] ss:$0 sm:$0xff]
    %v1060 = vld [vmem:[#allocation2 + $0x3] ss:$0 sm:$0xff]
    %v1061 = vmul.f32 %v1058, %v1059
    %vm1062 = vcmask 1047559
    %v1063 = vsel %vm1062, %v1061, 0.0
    %1064 = vadd.xlane.f32.xlu0 %v1063
    %v1065 = vpop.xlane.xlu0 %1064
    %v1066 = vadd.f32 %v1065, %v1060
    %vm1067 = vcmask 7175
    %1068 = vst.msk [vmem:[#allocation7 - $0x7] sm:$0x80] %vm1067, %v1066
    // Predicated region
    $region22: #{_lstm_pallas.1} parent=1 // pred_check
      _
    $region23: #{_lstm_pallas.1} parent=1 // pred_check_branch
      %1070 = sbr.rel (0) target = $region25
    $region24: #{_lstm_pallas.1} parent=1 // pred_region
      %1072 = vsyncadd [#allocation4], 0
      %s1074 = sshll.u32 [#allocation7], 4
      %s1075 = int_to_ptr.vmem [resolvable:$true] %s1074
      %s1076 = sshll.u32 %s3, 4
      %s1077 = int_to_ptr.hbm [resolvable:$true] %s1076
      %1079 = dma.vmem_to_hbm [thread:$0]  %s1075, 16, %s1077, [#allocation4]
    $region25: #{_lstm_pallas.1} parent=1 // pred_fallthru
      _
    // Predicated region
    $region26: #{_lstm_pallas.1} parent=1 // pred_check
      _
    $region27: #{_lstm_pallas.1} parent=1 // pred_check_branch
      %1081 = sbr.rel (0) target = $region29
    $region28: #{_lstm_pallas.1} parent=1 // pred_region
      %1083 = dma.done [#allocation4], 16
    $region29: #{_lstm_pallas.1} parent=1 // pred_fallthru
      _
    %1084 = vsyncpa [#allocation3], 1
    %1085 = vsyncpa [#allocation6], 1
    %1086 = vsyncpa [#allocation4], 1

</llo_original>
